<compile_context>
chip_gen: v5e
topology: v5e:2x2
jax: 0.10.0
libtpu: 0.0.40
codegen_flags: <defaults>
</compile_context>

<pallas_src>
import functools
import jax
import jax.numpy as jnp
from jax import lax
from jax.experimental import pallas as pl
from jax.experimental.pallas import tpu as pltpu


_NUM_SOURCES = 11  # token_id, type, size, dir, pos1d, left, upper, right, lower, h, w


def _round_up(x, m):
    return (x + m - 1) // m * m


def _embeddings2d_kernel(gidx_ref, table_ref, gamma_ref, beta_ref, out_ref,
                         *, variance, hidden):
    # gidx_ref : (TM, 11) int32  -- per-row, per-source GLOBAL row index into the
    #                              concatenated table (clamped + offset in wrapper)
    # table_ref: (Vp, Hp) bf16   -- 9 tables concatenated along vocab, zero-padded
    # gamma/beta: (1, Hp) f32    -- zero-padded beyond `hidden`
    # out_ref  : (TM, Hp) f32
    tm = gidx_ref.shape[0]
    vp = table_ref.shape[0]

    # One multi-hot over the fused vocab: row r gets +1 at each of its 11 global
    # indices.  Sources sharing a table (x: left&right, y: upper&lower) may
    # accumulate to 2.0, which equals summing both lookups.  Values 0/1/2 are
    # exact in bf16.
    col = lax.broadcasted_iota(jnp.int32, (tm, vp), 1)
    multihot = jnp.zeros((tm, vp), jnp.float32)
    for s in range(_NUM_SOURCES):
        multihot = multihot + (gidx_ref[:, s:s + 1] == col).astype(jnp.float32)

    # Single wide-K bf16 MXU matmul, f32 accumulation.
    emb = jnp.dot(multihot.astype(jnp.bfloat16), table_ref[...],
                  preferred_element_type=jnp.float32)            # (TM, Hp) f32

    # TF-style LayerNorm over the REAL hidden columns.  Padded columns of `emb`
    # are exactly zero (tables zero-padded on hidden), so plain lane-axis sums
    # already equal the sums over `hidden`.  Fused single pass: var = E[x^2]-u^2,
    # divide replaced by rsqrt (EUP slot).
    inv_h = jnp.float32(1.0 / hidden)
    u = jnp.sum(emb, axis=-1, keepdims=True) * inv_h
    ex2 = jnp.sum(emb * emb, axis=-1, keepdims=True) * inv_h
    var = ex2 - u * u
    x = (emb - u) * lax.rsqrt(var + variance)
    # gamma/beta are zero in padded lanes -> padded output lanes are exactly 0.
    out_ref[...] = gamma_ref[...] * x + beta_ref[...]
    # Dropout is identity in eval/inference mode.


def embeddings2d_forward(token_ids, bbox, params, *, variance,
                         token_type_ids=None, position_ids=None,
                         token_bbox_size=None, token_direction=None,
                         row_tile=256):
    B, S = token_ids.shape
    H = params["gamma"].shape[-1]

    if position_ids is None:
        position_ids = jnp.broadcast_to(
            jnp.arange(S, dtype=jnp.int32)[None, :], (B, S))
    if token_type_ids is None:
        token_type_ids = jnp.zeros_like(token_ids)
    if token_bbox_size is None:
        token_bbox_size = jnp.zeros_like(token_ids)
    if token_direction is None:
        token_direction = jnp.zeros_like(token_ids)

    # ---- Pack the 9 tables into ONE fused (Vp, Hp) bf16 table --------------
    # TODO(synk): for production-size token_id vocab (V >> S) replace its
    # one-hot segment with a scalar-prefetched DMA row-gather instead of
    # widening the fused matmul / holding the table resident in VMEM.
    table_names = ["token_id", "token_type", "token_size", "token_dir",
                   "pos1d", "pos2d_x", "pos2d_y", "pos2d_h", "pos2d_w"]
    tables = [params[n] for n in table_names]
    sizes = [int(t.shape[0]) for t in tables]
    offsets, off = [], 0
    for v in sizes:
        offsets.append(off)
        off += v
    sum_v = off
    Hp = _round_up(H, 128)
    Vp = _round_up(sum_v, 128)

    big = jnp.concatenate(tables, axis=0).astype(jnp.float32)      # (sum_v, H)
    big = jnp.pad(big, ((0, Vp - sum_v), (0, Hp - H)))
    big = big.astype(jnp.bfloat16)                                 # (Vp, Hp)

    gamma = jnp.pad(params["gamma"].astype(jnp.float32), (0, Hp - H)).reshape(1, Hp)
    beta = jnp.pad(params["beta"].astype(jnp.float32), (0, Hp - H)).reshape(1, Hp)

    # ---- Per-source global indices (clamp to table range + add offset) -----
    src_tbl = [0, 1, 2, 3, 4, 5, 6, 5, 6, 7, 8]   # which table each source reads
    raw = [token_ids, token_type_ids, token_bbox_size, token_direction,
           position_ids,
           bbox[:, :, 0], bbox[:, :, 1], bbox[:, :, 2], bbox[:, :, 3],
           bbox[:, :, 3] - bbox[:, :, 1],          # height
           bbox[:, :, 2] - bbox[:, :, 0]]          # width
    cols = []
    for s in range(_NUM_SOURCES):
        t = src_tbl[s]
        ids = jnp.clip(raw[s].astype(jnp.int32), 0, sizes[t] - 1) + offsets[t]
        cols.append(ids.reshape(-1))
    gidx = jnp.stack(cols, axis=-1)                                # (B*S, 11)

    # ---- Flatten (B, S) into a row axis and tile it -------------------------
    n_rows = B * S
    tm = min(row_tile, _round_up(n_rows, 8))
    n_pad = _round_up(n_rows, tm)
    gidx = jnp.pad(gidx, ((0, n_pad - n_rows), (0, 0)))

    kernel = functools.partial(_embeddings2d_kernel,
                               variance=float(variance), hidden=H)
    out = pl.pallas_call(
        kernel,
        out_shape=jax.ShapeDtypeStruct((n_pad, Hp), jnp.float32),
        grid_spec=pltpu.PrefetchScalarGridSpec(
            num_scalar_prefetch=0,
            grid=(n_pad // tm,),
            in_specs=[
                pl.BlockSpec((tm, _NUM_SOURCES), lambda i: (i, 0)),  # fused ids
                pl.BlockSpec((Vp, Hp), lambda i: (0, 0)),            # fused table
                pl.BlockSpec((1, Hp), lambda i: (0, 0)),             # gamma
                pl.BlockSpec((1, Hp), lambda i: (0, 0)),             # beta
            ],
            out_specs=pl.BlockSpec((tm, Hp), lambda i: (i, 0)),
        ),
        compiler_params=pltpu.CompilerParams(
            dimension_semantics=("parallel",),
            vmem_limit_bytes=64 * 1024 * 1024),
    )(gidx, big, gamma, beta)

    return out[:n_rows, :H].reshape(B, S, H)


def _reference(token_ids, bbox, params, variance, *, table_dtype=jnp.float32):
    """Pure-JAX reference (mirrors the PyTorch forward) for validation."""
    B, S = token_ids.shape
    pos = jnp.broadcast_to(jnp.arange(S, dtype=jnp.int32)[None, :], (B, S))
    zeros = jnp.zeros_like(token_ids)

    def take(tbl, ids):
        return jnp.take(tbl.astype(table_dtype).astype(jnp.float32), ids, axis=0)

    tok = (take(params["token_id"], token_ids)
           + take(params["token_type"], zeros)
           + take(params["token_size"], zeros)
           + take(params["token_dir"], zeros))
    p = (take(params["pos1d"], pos)
         + take(params["pos2d_x"], bbox[:, :, 0])
         + take(params["pos2d_y"], bbox[:, :, 1])
         + take(params["pos2d_x"], bbox[:, :, 2])
         + take(params["pos2d_y"], bbox[:, :, 3])
         + take(params["pos2d_h"], bbox[:, :, 3] - bbox[:, :, 1])
         + take(params["pos2d_w"], bbox[:, :, 2] - bbox[:, :, 0]))
    e = tok + p
    u = e.mean(-1, keepdims=True)
    s = ((e - u) ** 2).mean(-1, keepdims=True)
    e = (e - u) / jnp.sqrt(s + variance)
    return params["gamma"] * e + params["beta"]


if __name__ == "__main__":
    # Small config consistent with the module's __init__.
    id_vocab_size = 64
    type_vocab_size = 4
    token_max_size = 16
    token_num_direction = 4
    max_1d_position_embeddings = 128
    max_2d_position_embeddings = 64
    hidden_size = 32
    layer_norm_eps = 1e-12
    B, S = 2, 8

    key = jax.random.PRNGKey(0)
    keys = jax.random.split(key, 12)

    def emb_init(k, v, h):
        return (0.02 * jax.random.normal(k, (v, h))).astype(jnp.float32)

    token_id_tbl = emb_init(keys[0], id_vocab_size, hidden_size)
    token_id_tbl = token_id_tbl.at[0].set(0.0)  # padding_idx=0 (caller-maintained)
    params = {
        "token_id": token_id_tbl,
        "token_type": emb_init(keys[1], type_vocab_size, hidden_size),
        "token_size": emb_init(keys[2], token_max_size, hidden_size),
        "token_dir": emb_init(keys[3], token_num_direction, hidden_size),
        "pos1d": emb_init(keys[4], max_1d_position_embeddings, hidden_size),
        "pos2d_x": emb_init(keys[5], max_2d_position_embeddings, hidden_size),
        "pos2d_y": emb_init(keys[6], max_2d_position_embeddings, hidden_size),
        "pos2d_h": emb_init(keys[7], max_2d_position_embeddings, hidden_size),
        "pos2d_w": emb_init(keys[8], max_2d_position_embeddings, hidden_size),
        "gamma": jnp.ones((hidden_size,), jnp.float32),
        "beta": jnp.zeros((hidden_size,), jnp.float32),
    }

    token_ids = jax.random.randint(keys[9], (B, S), 0, id_vocab_size, jnp.int32)
    # bbox: (B, S, 4) = [left, upper, right, lower] with right>=left, lower>=upper
    lo = jax.random.randint(keys[10], (B, S, 2), 0, max_2d_position_embeddings // 2, jnp.int32)
    dlt = jax.random.randint(keys[11], (B, S, 2), 0, max_2d_position_embeddings // 2, jnp.int32)
    hi = lo + dlt
    bbox = jnp.stack([lo[..., 0], lo[..., 1], hi[..., 0], hi[..., 1]], axis=-1)

    out = embeddings2d_forward(token_ids, bbox, params, variance=layer_norm_eps)
    out = jax.block_until_ready(out)
    assert out.shape == (B, S, hidden_size)

    # Check against a reference using the same bf16-rounded tables (isolates
    # kernel mechanics from the intentional bf16 table quantization)...
    ref_bf16 = _reference(token_ids, bbox, params, layer_norm_eps,
                          table_dtype=jnp.bfloat16)
    assert jnp.allclose(out, ref_bf16, atol=2e-3, rtol=2e-3), "mismatch vs bf16 reference"
    # ...and a looser sanity check against the full-f32 reference.
    ref_f32 = _reference(token_ids, bbox, params, layer_norm_eps)
    assert jnp.allclose(out, ref_f32, atol=5e-2, rtol=5e-2), "mismatch vs f32 reference"

    print("KERNEL_OK")
</pallas_src>

<mosaic_0001>
module attributes {stable_mosaic.version = 11 : i64} {
  func.func @_embeddings2d_kernel(%arg0: i32, %arg1: memref<16x11xi32, #tpu.memory_space<vmem>>, %arg2: memref<512x128xbf16, #tpu.memory_space<vmem>>, %arg3: memref<1x128xf32, #tpu.memory_space<vmem>>, %arg4: memref<1x128xf32, #tpu.memory_space<vmem>>, %arg5: memref<16x128xf32, #tpu.memory_space<vmem>>) attributes {dimension_semantics = [#tpu.dimension_semantics<parallel>], iteration_bounds = array<i64: 1>, scalar_prefetch = 0 : i64, scratch_operands = 0 : i64, tpu.core_type = #tpu.core_type<tc>, window_params = [{transform_indices = @transform_0, window_bounds = array<i64: 16, 11>}, {pipeline_mode = #tpu.pipeline_mode<synchronous>, transform_indices = @transform_1, window_bounds = array<i64: 512, 128>}, {pipeline_mode = #tpu.pipeline_mode<synchronous>, transform_indices = @transform_2, window_bounds = array<i64: 1, 128>}, {pipeline_mode = #tpu.pipeline_mode<synchronous>, transform_indices = @transform_3, window_bounds = array<i64: 1, 128>}, {transform_indices = @transform_4, window_bounds = array<i64: 16, 128>}]} {
    %0 = tpu.iota {dimensions = array<i32: 1>} : vector<16x512xi32>
    %cst = arith.constant 0.000000e+00 : f32
    %1 = vector.broadcast %cst : f32 to vector<16x512xf32>
    %c0 = arith.constant 0 : index
    %c0_0 = arith.constant 0 : index
    %2 = vector.load %arg1[%c0, %c0_0] : memref<16x11xi32, #tpu.memory_space<vmem>>, vector<16x1xi32>
    %3 = vector.broadcast %2 : vector<16x1xi32> to vector<16x512xi32>
    %4 = arith.cmpi eq, %3, %0 : vector<16x512xi32>
    %5 = arith.extui %4 : vector<16x512xi1> to vector<16x512xi32>
    %6 = arith.sitofp %5 : vector<16x512xi32> to vector<16x512xf32>
    %7 = arith.addf %1, %6 : vector<16x512xf32>
    %c0_1 = arith.constant 0 : index
    %c1 = arith.constant 1 : index
    %8 = vector.load %arg1[%c0_1, %c1] : memref<16x11xi32, #tpu.memory_space<vmem>>, vector<16x1xi32>
    %9 = vector.broadcast %8 : vector<16x1xi32> to vector<16x512xi32>
    %10 = arith.cmpi eq, %9, %0 : vector<16x512xi32>
    %11 = arith.extui %10 : vector<16x512xi1> to vector<16x512xi32>
    %12 = arith.sitofp %11 : vector<16x512xi32> to vector<16x512xf32>
    %13 = arith.addf %7, %12 : vector<16x512xf32>
    %c0_2 = arith.constant 0 : index
    %c2 = arith.constant 2 : index
    %14 = vector.load %arg1[%c0_2, %c2] : memref<16x11xi32, #tpu.memory_space<vmem>>, vector<16x1xi32>
    %15 = vector.broadcast %14 : vector<16x1xi32> to vector<16x512xi32>
    %16 = arith.cmpi eq, %15, %0 : vector<16x512xi32>
    %17 = arith.extui %16 : vector<16x512xi1> to vector<16x512xi32>
    %18 = arith.sitofp %17 : vector<16x512xi32> to vector<16x512xf32>
    %19 = arith.addf %13, %18 : vector<16x512xf32>
    %c0_3 = arith.constant 0 : index
    %c3 = arith.constant 3 : index
    %20 = vector.load %arg1[%c0_3, %c3] : memref<16x11xi32, #tpu.memory_space<vmem>>, vector<16x1xi32>
    %21 = vector.broadcast %20 : vector<16x1xi32> to vector<16x512xi32>
    %22 = arith.cmpi eq, %21, %0 : vector<16x512xi32>
    %23 = arith.extui %22 : vector<16x512xi1> to vector<16x512xi32>
    %24 = arith.sitofp %23 : vector<16x512xi32> to vector<16x512xf32>
    %25 = arith.addf %19, %24 : vector<16x512xf32>
    %c0_4 = arith.constant 0 : index
    %c4 = arith.constant 4 : index
    %26 = vector.load %arg1[%c0_4, %c4] : memref<16x11xi32, #tpu.memory_space<vmem>>, vector<16x1xi32>
    %27 = vector.broadcast %26 : vector<16x1xi32> to vector<16x512xi32>
    %28 = arith.cmpi eq, %27, %0 : vector<16x512xi32>
    %29 = arith.extui %28 : vector<16x512xi1> to vector<16x512xi32>
    %30 = arith.sitofp %29 : vector<16x512xi32> to vector<16x512xf32>
    %31 = arith.addf %25, %30 : vector<16x512xf32>
    %c0_5 = arith.constant 0 : index
    %c5 = arith.constant 5 : index
    %32 = vector.load %arg1[%c0_5, %c5] : memref<16x11xi32, #tpu.memory_space<vmem>>, vector<16x1xi32>
    %33 = vector.broadcast %32 : vector<16x1xi32> to vector<16x512xi32>
    %34 = arith.cmpi eq, %33, %0 : vector<16x512xi32>
    %35 = arith.extui %34 : vector<16x512xi1> to vector<16x512xi32>
    %36 = arith.sitofp %35 : vector<16x512xi32> to vector<16x512xf32>
    %37 = arith.addf %31, %36 : vector<16x512xf32>
    %c0_6 = arith.constant 0 : index
    %c6 = arith.constant 6 : index
    %38 = vector.load %arg1[%c0_6, %c6] : memref<16x11xi32, #tpu.memory_space<vmem>>, vector<16x1xi32>
    %39 = vector.broadcast %38 : vector<16x1xi32> to vector<16x512xi32>
    %40 = arith.cmpi eq, %39, %0 : vector<16x512xi32>
    %41 = arith.extui %40 : vector<16x512xi1> to vector<16x512xi32>
    %42 = arith.sitofp %41 : vector<16x512xi32> to vector<16x512xf32>
    %43 = arith.addf %37, %42 : vector<16x512xf32>
    %c0_7 = arith.constant 0 : index
    %c7 = arith.constant 7 : index
    %44 = vector.load %arg1[%c0_7, %c7] : memref<16x11xi32, #tpu.memory_space<vmem>>, vector<16x1xi32>
    %45 = vector.broadcast %44 : vector<16x1xi32> to vector<16x512xi32>
    %46 = arith.cmpi eq, %45, %0 : vector<16x512xi32>
    %47 = arith.extui %46 : vector<16x512xi1> to vector<16x512xi32>
    %48 = arith.sitofp %47 : vector<16x512xi32> to vector<16x512xf32>
    %49 = arith.addf %43, %48 : vector<16x512xf32>
    %c0_8 = arith.constant 0 : index
    %c8 = arith.constant 8 : index
    %50 = vector.load %arg1[%c0_8, %c8] : memref<16x11xi32, #tpu.memory_space<vmem>>, vector<16x1xi32>
    %51 = vector.broadcast %50 : vector<16x1xi32> to vector<16x512xi32>
    %52 = arith.cmpi eq, %51, %0 : vector<16x512xi32>
    %53 = arith.extui %52 : vector<16x512xi1> to vector<16x512xi32>
    %54 = arith.sitofp %53 : vector<16x512xi32> to vector<16x512xf32>
    %55 = arith.addf %49, %54 : vector<16x512xf32>
    %c0_9 = arith.constant 0 : index
    %c9 = arith.constant 9 : index
    %56 = vector.load %arg1[%c0_9, %c9] : memref<16x11xi32, #tpu.memory_space<vmem>>, vector<16x1xi32>
    %57 = vector.broadcast %56 : vector<16x1xi32> to vector<16x512xi32>
    %58 = arith.cmpi eq, %57, %0 : vector<16x512xi32>
    %59 = arith.extui %58 : vector<16x512xi1> to vector<16x512xi32>
    %60 = arith.sitofp %59 : vector<16x512xi32> to vector<16x512xf32>
    %61 = arith.addf %55, %60 : vector<16x512xf32>
    %c0_10 = arith.constant 0 : index
    %c10 = arith.constant 10 : index
    %62 = vector.load %arg1[%c0_10, %c10] : memref<16x11xi32, #tpu.memory_space<vmem>>, vector<16x1xi32>
    %63 = vector.broadcast %62 : vector<16x1xi32> to vector<16x512xi32>
    %64 = arith.cmpi eq, %63, %0 : vector<16x512xi32>
    %65 = arith.extui %64 : vector<16x512xi1> to vector<16x512xi32>
    %66 = arith.sitofp %65 : vector<16x512xi32> to vector<16x512xf32>
    %67 = arith.addf %61, %66 : vector<16x512xf32>
    %68 = arith.truncf %67 : vector<16x512xf32> to vector<16x512xbf16>
    %c0_11 = arith.constant 0 : index
    %c0_12 = arith.constant 0 : index
    %69 = vector.load %arg2[%c0_11, %c0_12] : memref<512x128xbf16, #tpu.memory_space<vmem>>, vector<512x128xbf16>
    %cst_13 = arith.constant dense<0.000000e+00> : vector<16x128xf32>
    %70 = tpu.matmul %68, %69, %cst_13 {dimension_numbers = #tpu.dot_dimension_numbers<[1], [0], [0], [1], [0, 0, 1, 1], [], []>} : vector<16x512xbf16>, vector<512x128xbf16>, vector<16x128xf32> -> vector<16x128xf32>
    %cst_14 = arith.constant dense<0.000000e+00> : vector<16xf32>
    %71 = vector.multi_reduction <add>, %70, %cst_14 [1] : vector<16x128xf32> to vector<16xf32>
    %72 = vector.shape_cast %71 : vector<16xf32> to vector<16x1xf32>
    %cst_15 = arith.constant 3.125000e-02 : f32
    %73 = vector.broadcast %cst_15 : f32 to vector<16x1xf32>
    %74 = arith.mulf %72, %73 : vector<16x1xf32>
    %75 = arith.mulf %70, %70 : vector<16x128xf32>
    %cst_16 = arith.constant dense<0.000000e+00> : vector<16xf32>
    %76 = vector.multi_reduction <add>, %75, %cst_16 [1] : vector<16x128xf32> to vector<16xf32>
    %77 = vector.shape_cast %76 : vector<16xf32> to vector<16x1xf32>
    %cst_17 = arith.constant 3.125000e-02 : f32
    %78 = vector.broadcast %cst_17 : f32 to vector<16x1xf32>
    %79 = arith.mulf %77, %78 : vector<16x1xf32>
    %80 = arith.mulf %74, %74 : vector<16x1xf32>
    %81 = arith.subf %79, %80 : vector<16x1xf32>
    %82 = vector.broadcast %74 : vector<16x1xf32> to vector<16x128xf32>
    %83 = arith.subf %70, %82 : vector<16x128xf32>
    %cst_18 = arith.constant 9.99999996E-13 : f32
    %84 = vector.broadcast %cst_18 : f32 to vector<16x1xf32>
    %85 = arith.addf %81, %84 : vector<16x1xf32>
    %86 = math.rsqrt %85 : vector<16x1xf32>
    %87 = vector.broadcast %86 : vector<16x1xf32> to vector<16x128xf32>
    %88 = arith.mulf %83, %87 : vector<16x128xf32>
    %c0_19 = arith.constant 0 : index
    %c0_20 = arith.constant 0 : index
    %89 = vector.load %arg3[%c0_19, %c0_20] : memref<1x128xf32, #tpu.memory_space<vmem>>, vector<1x128xf32>
    %90 = vector.broadcast %89 : vector<1x128xf32> to vector<16x128xf32>
    %91 = arith.mulf %90, %88 : vector<16x128xf32>
    %c0_21 = arith.constant 0 : index
    %c0_22 = arith.constant 0 : index
    %92 = vector.load %arg4[%c0_21, %c0_22] : memref<1x128xf32, #tpu.memory_space<vmem>>, vector<1x128xf32>
    %93 = vector.broadcast %92 : vector<1x128xf32> to vector<16x128xf32>
    %94 = arith.addf %91, %93 : vector<16x128xf32>
    %c0_23 = arith.constant 0 : index
    %c0_24 = arith.constant 0 : index
    %95 = vector.load %arg5[%c0_23, %c0_24] : memref<16x128xf32, #tpu.memory_space<vmem>>, vector<16x128xf32>
    tpu.vector_store %arg5[%c0_23, %c0_24], %94 {strides = array<i32>} : memref<16x128xf32, #tpu.memory_space<vmem>>, vector<16x128xf32>,
    return
  }
  func.func @transform_0(%arg0: i32) -> (i32, i32) {
    %c0_i32 = arith.constant 0 : i32
    %c0_i32_0 = arith.constant 0 : i32
    return %arg0, %c0_i32 : i32, i32
  }
  func.func @transform_1(%arg0: i32) -> (i32, i32) {
    %c0_i32 = arith.constant 0 : i32
    %c0_i32_0 = arith.constant 0 : i32
    %c0_i32_1 = arith.constant 0 : i32
    return %c0_i32, %c0_i32_0 : i32, i32
  }
  func.func @transform_2(%arg0: i32) -> (i32, i32) {
    %c0_i32 = arith.constant 0 : i32
    %c0_i32_0 = arith.constant 0 : i32
    %c0_i32_1 = arith.constant 0 : i32
    return %c0_i32, %c0_i32_0 : i32, i32
  }
  func.func @transform_3(%arg0: i32) -> (i32, i32) {
    %c0_i32 = arith.constant 0 : i32
    %c0_i32_0 = arith.constant 0 : i32
    %c0_i32_1 = arith.constant 0 : i32
    return %c0_i32, %c0_i32_0 : i32, i32
  }
  func.func @transform_4(%arg0: i32) -> (i32, i32) {
    %c0_i32 = arith.constant 0 : i32
    %c0_i32_0 = arith.constant 0 : i32
    return %arg0, %c0_i32 : i32, i32
  }
}

</mosaic_0001>

<llo_original>
// kernel: tpu_custom_call.1
$region0: #{tpu_custom_call.1}
  #allocation0 [shape = 'u32[]', space=smem, size = 0x4, offset = 0x4, fixed_abs, tag = 'smem constant byte address 0x4 - core index']
  #allocation1 [shape = 'u32[72,128]{1,0:T(1,128)}', space=vmem, size = 0x9000, scoped, tag = 'internal scratch']
  %s0 = inlined_call_operand.hbm [shape: s32[16,11], index: 0, kind: input, shape index: {}]
  %s1 = inlined_call_operand.hbm [shape: bf16[512,128], index: 1, kind: input, shape index: {}]
  %s2 = inlined_call_operand.vmem [shape: f32[1,128], index: 2, kind: input, shape index: {}]
  %s3 = inlined_call_operand.vmem [shape: f32[1,128], index: 3, kind: input, shape index: {}]
  %s4 = inlined_call_operand.hbm [shape: f32[16,128], index: 4, kind: output, shape index: {}]
  %s5 = sld [smem:[#allocation0]]
  $region34: #{tpu_custom_call.1} parent=0
    _
  %s7 = ssub.s32 1, %s5
  %s8 = scalar_select 0, %s7, %s5
  $region1: #{tpu_custom_call.1} parent=0
    #allocation2 [shape = 'u8[8192]{0}', space=vmem, size = 0x2000, scoped, tag = 'input window, operand 0, single buffered']
    #allocation3 [shape = 's32[1]{0}', space=sflag, size = 0x4, scoped, tag = 'scoped memory for tpu_custom_call.1']
    #allocation4 [shape = 's32[1]{0}', space=sflag, size = 0x4, scoped, tag = 'scoped memory for tpu_custom_call.1']
    #allocation5 [shape = 'u8[131072]{0}', space=vmem, size = 0x20000, scoped, tag = 'input window, operand 1, single buffered']
    #allocation6 [shape = 's32[1]{0}', space=sflag, size = 0x4, scoped, tag = 'scoped memory for tpu_custom_call.1']
    #allocation7 [shape = 'u8[8192]{0}', space=vmem, size = 0x2000, scoped, tag = 'output window, operand 0, single buffered']
    %9 = vsyncpa [#allocation3], 0
    %10 = vsyncpa [#allocation6], 0
    %11 = vsyncpa [#allocation4], 0
    // Predicated region
    $region2: #{tpu_custom_call.1} parent=1 // pred_check
      _
    $region3: #{tpu_custom_call.1} parent=1 // pred_check_branch
      %13 = sbr.rel (0) target = $region5
    $region4: #{tpu_custom_call.1} parent=1 // pred_region
      %15 = vsyncadd [#allocation3], 0
      %s16 = sshll.u32 %s0, 4
      %s17 = int_to_ptr.hbm [resolvable:$true] %s16
      %s18 = sshll.u32 [#allocation2], 4
      %s19 = int_to_ptr.vmem [resolvable:$true] %s18
      %24 = dma.hbm_to_vmem [thread:$0]  %s17, 256, %s19, [#allocation3], 128, 128, 8
    $region5: #{tpu_custom_call.1} parent=1 // pred_fallthru
      _
    // Predicated region
    $region6: #{tpu_custom_call.1} parent=1 // pred_check
      _
    $region7: #{tpu_custom_call.1} parent=1 // pred_check_branch
      %26 = sbr.rel (0) target = $region9
    $region8: #{tpu_custom_call.1} parent=1 // pred_region
      %28 = vsyncadd [#allocation6], 0
      %s29 = sshll.u32 %s1, 4
      %s30 = int_to_ptr.hbm [resolvable:$true] %s29
      %s31 = sshll.u32 [#allocation5], 4
      %s32 = int_to_ptr.vmem [resolvable:$true] %s31
      %37 = dma.hbm_to_vmem [thread:$0]  %s30, 4096, %s32, [#allocation6], 64, 64, 4
    $region9: #{tpu_custom_call.1} parent=1 // pred_fallthru
      _
    // Predicated region
    $region10: #{tpu_custom_call.1} parent=1 // pred_check
      _
    $region11: #{tpu_custom_call.1} parent=1 // pred_check_branch
      %39 = sbr.rel (0) target = $region13
    $region12: #{tpu_custom_call.1} parent=1 // pred_region
      _
    $region13: #{tpu_custom_call.1} parent=1 // pred_fallthru
      _
    // Predicated region
    $region14: #{tpu_custom_call.1} parent=1 // pred_check
      _
    $region15: #{tpu_custom_call.1} parent=1 // pred_check_branch
      %41 = sbr.rel (0) target = $region17
    $region16: #{tpu_custom_call.1} parent=1 // pred_region
      _
    $region17: #{tpu_custom_call.1} parent=1 // pred_fallthru
      _
    // Predicated region
    $region18: #{tpu_custom_call.1} parent=1 // pred_check
      _
    $region19: #{tpu_custom_call.1} parent=1 // pred_check_branch
      %43 = sbr.rel (0) target = $region21
    $region20: #{tpu_custom_call.1} parent=1 // pred_region
      %45 = dma.done [#allocation3], 256
    $region21: #{tpu_custom_call.1} parent=1 // pred_fallthru
      _
    // Predicated region
    $region22: #{tpu_custom_call.1} parent=1 // pred_check
      _
    $region23: #{tpu_custom_call.1} parent=1 // pred_check_branch
      %47 = sbr.rel (0) target = $region25
    $region24: #{tpu_custom_call.1} parent=1 // pred_region
      %49 = dma.done [#allocation6], 4096
    $region25: #{tpu_custom_call.1} parent=1 // pred_fallthru
      _
    %v50 = vlaneseq
    %v51 = vand.u32 %v50, 127
    %v52 = vadd.s32 %v51, 128
    %v53 = vadd.s32 %v51, 256
    %v54 = vadd.s32 %v51, 384
    %v55 = vld [vmem:[#allocation2] sm:$0xff]
    %v56 = vld [vmem:[#allocation2 + $0x8] sm:$0xff]
    %57 = vset.pattern.permute.xlu0 0
    %58 = vperm.xlu0 %57, %v55
    %v59 = vpop.permute.xlu0 %58
    %60 = vset.pattern.permute.xlu0 0
    %61 = vperm.xlu0 %60, %v56
    %v62 = vpop.permute.xlu0 %61
    %vm63 = vcmp.eq.s32.totalorder %v59, %v51
    %vm64 = vcmp.eq.s32.totalorder %v59, %v52
    %vm65 = vcmp.eq.s32.totalorder %v59, %v53
    %vm66 = vcmp.eq.s32.totalorder %v59, %v54
    %vm67 = vcmp.eq.s32.totalorder %v62, %v51
    %vm68 = vcmp.eq.s32.totalorder %v62, %v52
    %vm69 = vcmp.eq.s32.totalorder %v62, %v53
    %vm70 = vcmp.eq.s32.totalorder %v62, %v54
    %v71 = vsel %vm63, 1, 0
    %v72 = vsel %vm64, 1, 0
    %v73 = vsel %vm65, 1, 0
    %v74 = vsel %vm66, 1, 0
    %v75 = vsel %vm67, 1, 0
    %v76 = vsel %vm68, 1, 0
    %v77 = vsel %vm69, 1, 0
    %v78 = vsel %vm70, 1, 0
    %v79 = vcvt.s32.f32 %v71
    %v80 = vcvt.s32.f32 %v72
    %v81 = vcvt.s32.f32 %v73
    %v82 = vcvt.s32.f32 %v74
    %v83 = vcvt.s32.f32 %v75
    %v84 = vcvt.s32.f32 %v76
    %v85 = vcvt.s32.f32 %v77
    %v86 = vcvt.s32.f32 %v78
    %v87 = vadd.f32 %v79, 0.0
    %v88 = vadd.f32 %v80, 0.0
    %v89 = vadd.f32 %v81, 0.0
    %v90 = vadd.f32 %v82, 0.0
    %v91 = vadd.f32 %v83, 0.0
    %v92 = vadd.f32 %v84, 0.0
    %v93 = vadd.f32 %v85, 0.0
    %v94 = vadd.f32 %v86, 0.0
    %95 = vset.pattern.permute.xlu0 1
    %96 = vperm.xlu0 %95, %v55
    %v97 = vpop.permute.xlu0 %96
    %98 = vset.pattern.permute.xlu0 1
    %99 = vperm.xlu0 %98, %v56
    %v100 = vpop.permute.xlu0 %99
    %vm101 = vcmp.eq.s32.totalorder %v97, %v51
    %vm102 = vcmp.eq.s32.totalorder %v97, %v52
    %vm103 = vcmp.eq.s32.totalorder %v97, %v53
    %vm104 = vcmp.eq.s32.totalorder %v97, %v54
    %vm105 = vcmp.eq.s32.totalorder %v100, %v51
    %vm106 = vcmp.eq.s32.totalorder %v100, %v52
    %vm107 = vcmp.eq.s32.totalorder %v100, %v53
    %vm108 = vcmp.eq.s32.totalorder %v100, %v54
    %v109 = vsel %vm101, 1, 0
    %v110 = vsel %vm102, 1, 0
    %v111 = vsel %vm103, 1, 0
    %v112 = vsel %vm104, 1, 0
    %v113 = vsel %vm105, 1, 0
    %v114 = vsel %vm106, 1, 0
    %v115 = vsel %vm107, 1, 0
    %v116 = vsel %vm108, 1, 0
    %v117 = vcvt.s32.f32 %v109
    %v118 = vcvt.s32.f32 %v110
    %v119 = vcvt.s32.f32 %v111
    %v120 = vcvt.s32.f32 %v112
    %v121 = vcvt.s32.f32 %v113
    %v122 = vcvt.s32.f32 %v114
    %v123 = vcvt.s32.f32 %v115
    %v124 = vcvt.s32.f32 %v116
    %v125 = vadd.f32 %v87, %v117
    %v126 = vadd.f32 %v88, %v118
    %v127 = vadd.f32 %v89, %v119
    %v128 = vadd.f32 %v90, %v120
    %v129 = vadd.f32 %v91, %v121
    %v130 = vadd.f32 %v92, %v122
    %v131 = vadd.f32 %v93, %v123
    %v132 = vadd.f32 %v94, %v124
    %133 = vset.pattern.permute.xlu0 2
    %134 = vperm.xlu0 %133, %v55
    %v135 = vpop.permute.xlu0 %134
    %136 = vset.pattern.permute.xlu0 2
    %137 = vperm.xlu0 %136, %v56
    %v138 = vpop.permute.xlu0 %137
    %vm139 = vcmp.eq.s32.totalorder %v135, %v51
    %vm140 = vcmp.eq.s32.totalorder %v135, %v52
    %vm141 = vcmp.eq.s32.totalorder %v135, %v53
    %vm142 = vcmp.eq.s32.totalorder %v135, %v54
    %vm143 = vcmp.eq.s32.totalorder %v138, %v51
    %vm144 = vcmp.eq.s32.totalorder %v138, %v52
    %vm145 = vcmp.eq.s32.totalorder %v138, %v53
    %vm146 = vcmp.eq.s32.totalorder %v138, %v54
    %v147 = vsel %vm139, 1, 0
    %v148 = vsel %vm140, 1, 0
    %v149 = vsel %vm141, 1, 0
    %v150 = vsel %vm142, 1, 0
    %v151 = vsel %vm143, 1, 0
    %v152 = vsel %vm144, 1, 0
    %v153 = vsel %vm145, 1, 0
    %v154 = vsel %vm146, 1, 0
    %v155 = vcvt.s32.f32 %v147
    %v156 = vcvt.s32.f32 %v148
    %v157 = vcvt.s32.f32 %v149
    %v158 = vcvt.s32.f32 %v150
    %v159 = vcvt.s32.f32 %v151
    %v160 = vcvt.s32.f32 %v152
    %v161 = vcvt.s32.f32 %v153
    %v162 = vcvt.s32.f32 %v154
    %v163 = vadd.f32 %v125, %v155
    %v164 = vadd.f32 %v126, %v156
    %v165 = vadd.f32 %v127, %v157
    %v166 = vadd.f32 %v128, %v158
    %v167 = vadd.f32 %v129, %v159
    %v168 = vadd.f32 %v130, %v160
    %v169 = vadd.f32 %v131, %v161
    %v170 = vadd.f32 %v132, %v162
    %171 = vset.pattern.permute.xlu0 3
    %172 = vperm.xlu0 %171, %v55
    %v173 = vpop.permute.xlu0 %172
    %174 = vset.pattern.permute.xlu0 3
    %175 = vperm.xlu0 %174, %v56
    %v176 = vpop.permute.xlu0 %175
    %vm177 = vcmp.eq.s32.totalorder %v173, %v51
    %vm178 = vcmp.eq.s32.totalorder %v173, %v52
    %vm179 = vcmp.eq.s32.totalorder %v173, %v53
    %vm180 = vcmp.eq.s32.totalorder %v173, %v54
    %vm181 = vcmp.eq.s32.totalorder %v176, %v51
    %vm182 = vcmp.eq.s32.totalorder %v176, %v52
    %vm183 = vcmp.eq.s32.totalorder %v176, %v53
    %vm184 = vcmp.eq.s32.totalorder %v176, %v54
    %v185 = vsel %vm177, 1, 0
    %v186 = vsel %vm178, 1, 0
    %v187 = vsel %vm179, 1, 0
    %v188 = vsel %vm180, 1, 0
    %v189 = vsel %vm181, 1, 0
    %v190 = vsel %vm182, 1, 0
    %v191 = vsel %vm183, 1, 0
    %v192 = vsel %vm184, 1, 0
    %v193 = vcvt.s32.f32 %v185
    %v194 = vcvt.s32.f32 %v186
    %v195 = vcvt.s32.f32 %v187
    %v196 = vcvt.s32.f32 %v188
    %v197 = vcvt.s32.f32 %v189
    %v198 = vcvt.s32.f32 %v190
    %v199 = vcvt.s32.f32 %v191
    %v200 = vcvt.s32.f32 %v192
    %v201 = vadd.f32 %v163, %v193
    %v202 = vadd.f32 %v164, %v194
    %v203 = vadd.f32 %v165, %v195
    %v204 = vadd.f32 %v166, %v196
    %v205 = vadd.f32 %v167, %v197
    %v206 = vadd.f32 %v168, %v198
    %v207 = vadd.f32 %v169, %v199
    %v208 = vadd.f32 %v170, %v200
    %209 = vset.pattern.permute.xlu0 4
    %210 = vperm.xlu0 %209, %v55
    %v211 = vpop.permute.xlu0 %210
    %212 = vset.pattern.permute.xlu0 4
    %213 = vperm.xlu0 %212, %v56
    %v214 = vpop.permute.xlu0 %213
    %vm215 = vcmp.eq.s32.totalorder %v211, %v51
    %vm216 = vcmp.eq.s32.totalorder %v211, %v52
    %vm217 = vcmp.eq.s32.totalorder %v211, %v53
    %vm218 = vcmp.eq.s32.totalorder %v211, %v54
    %vm219 = vcmp.eq.s32.totalorder %v214, %v51
    %vm220 = vcmp.eq.s32.totalorder %v214, %v52
    %vm221 = vcmp.eq.s32.totalorder %v214, %v53
    %vm222 = vcmp.eq.s32.totalorder %v214, %v54
    %v223 = vsel %vm215, 1, 0
    %v224 = vsel %vm216, 1, 0
    %v225 = vsel %vm217, 1, 0
    %v226 = vsel %vm218, 1, 0
    %v227 = vsel %vm219, 1, 0
    %v228 = vsel %vm220, 1, 0
    %v229 = vsel %vm221, 1, 0
    %v230 = vsel %vm222, 1, 0
    %v231 = vcvt.s32.f32 %v223
    %v232 = vcvt.s32.f32 %v224
    %v233 = vcvt.s32.f32 %v225
    %v234 = vcvt.s32.f32 %v226
    %v235 = vcvt.s32.f32 %v227
    %v236 = vcvt.s32.f32 %v228
    %v237 = vcvt.s32.f32 %v229
    %v238 = vcvt.s32.f32 %v230
    %v239 = vadd.f32 %v201, %v231
    %v240 = vadd.f32 %v202, %v232
    %v241 = vadd.f32 %v203, %v233
    %v242 = vadd.f32 %v204, %v234
    %v243 = vadd.f32 %v205, %v235
    %v244 = vadd.f32 %v206, %v236
    %v245 = vadd.f32 %v207, %v237
    %v246 = vadd.f32 %v208, %v238
    %247 = vset.pattern.permute.xlu0 5
    %248 = vperm.xlu0 %247, %v55
    %v249 = vpop.permute.xlu0 %248
    %250 = vset.pattern.permute.xlu0 5
    %251 = vperm.xlu0 %250, %v56
    %v252 = vpop.permute.xlu0 %251
    %vm253 = vcmp.eq.s32.totalorder %v249, %v51
    %vm254 = vcmp.eq.s32.totalorder %v249, %v52
    %vm255 = vcmp.eq.s32.totalorder %v249, %v53
    %vm256 = vcmp.eq.s32.totalorder %v249, %v54
    %vm257 = vcmp.eq.s32.totalorder %v252, %v51
    %vm258 = vcmp.eq.s32.totalorder %v252, %v52
    %vm259 = vcmp.eq.s32.totalorder %v252, %v53
    %vm260 = vcmp.eq.s32.totalorder %v252, %v54
    %v261 = vsel %vm253, 1, 0
    %v262 = vsel %vm254, 1, 0
    %v263 = vsel %vm255, 1, 0
    %v264 = vsel %vm256, 1, 0
    %v265 = vsel %vm257, 1, 0
    %v266 = vsel %vm258, 1, 0
    %v267 = vsel %vm259, 1, 0
    %v268 = vsel %vm260, 1, 0
    %v269 = vcvt.s32.f32 %v261
    %v270 = vcvt.s32.f32 %v262
    %v271 = vcvt.s32.f32 %v263
    %v272 = vcvt.s32.f32 %v264
    %v273 = vcvt.s32.f32 %v265
    %v274 = vcvt.s32.f32 %v266
    %v275 = vcvt.s32.f32 %v267
    %v276 = vcvt.s32.f32 %v268
    %v277 = vadd.f32 %v239, %v269
    %v278 = vadd.f32 %v240, %v270
    %v279 = vadd.f32 %v241, %v271
    %v280 = vadd.f32 %v242, %v272
    %v281 = vadd.f32 %v243, %v273
    %v282 = vadd.f32 %v244, %v274
    %v283 = vadd.f32 %v245, %v275
    %v284 = vadd.f32 %v246, %v276
    %285 = vset.pattern.permute.xlu0 6
    %286 = vperm.xlu0 %285, %v55
    %v287 = vpop.permute.xlu0 %286
    %288 = vset.pattern.permute.xlu0 6
    %289 = vperm.xlu0 %288, %v56
    %v290 = vpop.permute.xlu0 %289
    %vm291 = vcmp.eq.s32.totalorder %v287, %v51
    %vm292 = vcmp.eq.s32.totalorder %v287, %v52
    %vm293 = vcmp.eq.s32.totalorder %v287, %v53
    %vm294 = vcmp.eq.s32.totalorder %v287, %v54
    %vm295 = vcmp.eq.s32.totalorder %v290, %v51
    %vm296 = vcmp.eq.s32.totalorder %v290, %v52
    %vm297 = vcmp.eq.s32.totalorder %v290, %v53
    %vm298 = vcmp.eq.s32.totalorder %v290, %v54
    %v299 = vsel %vm291, 1, 0
    %v300 = vsel %vm292, 1, 0
    %v301 = vsel %vm293, 1, 0
    %v302 = vsel %vm294, 1, 0
    %v303 = vsel %vm295, 1, 0
    %v304 = vsel %vm296, 1, 0
    %v305 = vsel %vm297, 1, 0
    %v306 = vsel %vm298, 1, 0
    %v307 = vcvt.s32.f32 %v299
    %v308 = vcvt.s32.f32 %v300
    %v309 = vcvt.s32.f32 %v301
    %v310 = vcvt.s32.f32 %v302
    %v311 = vcvt.s32.f32 %v303
    %v312 = vcvt.s32.f32 %v304
    %v313 = vcvt.s32.f32 %v305
    %v314 = vcvt.s32.f32 %v306
    %v315 = vadd.f32 %v277, %v307
    %v316 = vadd.f32 %v278, %v308
    %v317 = vadd.f32 %v279, %v309
    %v318 = vadd.f32 %v280, %v310
    %v319 = vadd.f32 %v281, %v311
    %v320 = vadd.f32 %v282, %v312
    %v321 = vadd.f32 %v283, %v313
    %v322 = vadd.f32 %v284, %v314
    %323 = vset.pattern.permute.xlu0 7
    %324 = vperm.xlu0 %323, %v55
    %v325 = vpop.permute.xlu0 %324
    %326 = vset.pattern.permute.xlu0 7
    %327 = vperm.xlu0 %326, %v56
    %v328 = vpop.permute.xlu0 %327
    %vm329 = vcmp.eq.s32.totalorder %v325, %v51
    %vm330 = vcmp.eq.s32.totalorder %v325, %v52
    %vm331 = vcmp.eq.s32.totalorder %v325, %v53
    %vm332 = vcmp.eq.s32.totalorder %v325, %v54
    %vm333 = vcmp.eq.s32.totalorder %v328, %v51
    %vm334 = vcmp.eq.s32.totalorder %v328, %v52
    %vm335 = vcmp.eq.s32.totalorder %v328, %v53
    %vm336 = vcmp.eq.s32.totalorder %v328, %v54
    %v337 = vsel %vm329, 1, 0
    %v338 = vsel %vm330, 1, 0
    %v339 = vsel %vm331, 1, 0
    %v340 = vsel %vm332, 1, 0
    %v341 = vsel %vm333, 1, 0
    %v342 = vsel %vm334, 1, 0
    %v343 = vsel %vm335, 1, 0
    %v344 = vsel %vm336, 1, 0
    %v345 = vcvt.s32.f32 %v337
    %v346 = vcvt.s32.f32 %v338
    %v347 = vcvt.s32.f32 %v339
    %v348 = vcvt.s32.f32 %v340
    %v349 = vcvt.s32.f32 %v341
    %v350 = vcvt.s32.f32 %v342
    %v351 = vcvt.s32.f32 %v343
    %v352 = vcvt.s32.f32 %v344
    %v353 = vadd.f32 %v315, %v345
    %v354 = vadd.f32 %v316, %v346
    %v355 = vadd.f32 %v317, %v347
    %v356 = vadd.f32 %v318, %v348
    %v357 = vadd.f32 %v319, %v349
    %v358 = vadd.f32 %v320, %v350
    %v359 = vadd.f32 %v321, %v351
    %v360 = vadd.f32 %v322, %v352
    %361 = vset.pattern.permute.xlu0 8
    %362 = vperm.xlu0 %361, %v55
    %v363 = vpop.permute.xlu0 %362
    %364 = vset.pattern.permute.xlu0 8
    %365 = vperm.xlu0 %364, %v56
    %v366 = vpop.permute.xlu0 %365
    %vm367 = vcmp.eq.s32.totalorder %v363, %v51
    %vm368 = vcmp.eq.s32.totalorder %v363, %v52
    %vm369 = vcmp.eq.s32.totalorder %v363, %v53
    %vm370 = vcmp.eq.s32.totalorder %v363, %v54
    %vm371 = vcmp.eq.s32.totalorder %v366, %v51
    %vm372 = vcmp.eq.s32.totalorder %v366, %v52
    %vm373 = vcmp.eq.s32.totalorder %v366, %v53
    %vm374 = vcmp.eq.s32.totalorder %v366, %v54
    %v375 = vsel %vm367, 1, 0
    %v376 = vsel %vm368, 1, 0
    %v377 = vsel %vm369, 1, 0
    %v378 = vsel %vm370, 1, 0
    %v379 = vsel %vm371, 1, 0
    %v380 = vsel %vm372, 1, 0
    %v381 = vsel %vm373, 1, 0
    %v382 = vsel %vm374, 1, 0
    %v383 = vcvt.s32.f32 %v375
    %v384 = vcvt.s32.f32 %v376
    %v385 = vcvt.s32.f32 %v377
    %v386 = vcvt.s32.f32 %v378
    %v387 = vcvt.s32.f32 %v379
    %v388 = vcvt.s32.f32 %v380
    %v389 = vcvt.s32.f32 %v381
    %v390 = vcvt.s32.f32 %v382
    %v391 = vadd.f32 %v353, %v383
    %v392 = vadd.f32 %v354, %v384
    %v393 = vadd.f32 %v355, %v385
    %v394 = vadd.f32 %v356, %v386
    %v395 = vadd.f32 %v357, %v387
    %v396 = vadd.f32 %v358, %v388
    %v397 = vadd.f32 %v359, %v389
    %v398 = vadd.f32 %v360, %v390
    %399 = vset.pattern.permute.xlu0 9
    %400 = vperm.xlu0 %399, %v55
    %v401 = vpop.permute.xlu0 %400
    %402 = vset.pattern.permute.xlu0 9
    %403 = vperm.xlu0 %402, %v56
    %v404 = vpop.permute.xlu0 %403
    %vm405 = vcmp.eq.s32.totalorder %v401, %v51
    %vm406 = vcmp.eq.s32.totalorder %v401, %v52
    %vm407 = vcmp.eq.s32.totalorder %v401, %v53
    %vm408 = vcmp.eq.s32.totalorder %v401, %v54
    %vm409 = vcmp.eq.s32.totalorder %v404, %v51
    %vm410 = vcmp.eq.s32.totalorder %v404, %v52
    %vm411 = vcmp.eq.s32.totalorder %v404, %v53
    %vm412 = vcmp.eq.s32.totalorder %v404, %v54
    %v413 = vsel %vm405, 1, 0
    %v414 = vsel %vm406, 1, 0
    %v415 = vsel %vm407, 1, 0
    %v416 = vsel %vm408, 1, 0
    %v417 = vsel %vm409, 1, 0
    %v418 = vsel %vm410, 1, 0
    %v419 = vsel %vm411, 1, 0
    %v420 = vsel %vm412, 1, 0
    %v421 = vcvt.s32.f32 %v413
    %v422 = vcvt.s32.f32 %v414
    %v423 = vcvt.s32.f32 %v415
    %v424 = vcvt.s32.f32 %v416
    %v425 = vcvt.s32.f32 %v417
    %v426 = vcvt.s32.f32 %v418
    %v427 = vcvt.s32.f32 %v419
    %v428 = vcvt.s32.f32 %v420
    %v429 = vadd.f32 %v391, %v421
    %v430 = vadd.f32 %v392, %v422
    %v431 = vadd.f32 %v393, %v423
    %v432 = vadd.f32 %v394, %v424
    %v433 = vadd.f32 %v395, %v425
    %v434 = vadd.f32 %v396, %v426
    %v435 = vadd.f32 %v397, %v427
    %v436 = vadd.f32 %v398, %v428
    %437 = vset.pattern.permute.xlu0 10
    %438 = vperm.xlu0 %437, %v55
    %v439 = vpop.permute.xlu0 %438
    %440 = vset.pattern.permute.xlu0 10
    %441 = vperm.xlu0 %440, %v56
    %v442 = vpop.permute.xlu0 %441
    %vm443 = vcmp.eq.s32.totalorder %v439, %v51
    %vm444 = vcmp.eq.s32.totalorder %v439, %v52
    %vm445 = vcmp.eq.s32.totalorder %v439, %v53
    %vm446 = vcmp.eq.s32.totalorder %v439, %v54
    %vm447 = vcmp.eq.s32.totalorder %v442, %v51
    %vm448 = vcmp.eq.s32.totalorder %v442, %v52
    %vm449 = vcmp.eq.s32.totalorder %v442, %v53
    %vm450 = vcmp.eq.s32.totalorder %v442, %v54
    %v451 = vsel %vm443, 1, 0
    %v452 = vsel %vm444, 1, 0
    %v453 = vsel %vm445, 1, 0
    %v454 = vsel %vm446, 1, 0
    %v455 = vsel %vm447, 1, 0
    %v456 = vsel %vm448, 1, 0
    %v457 = vsel %vm449, 1, 0
    %v458 = vsel %vm450, 1, 0
    %v459 = vcvt.s32.f32 %v451
    %v460 = vcvt.s32.f32 %v452
    %v461 = vcvt.s32.f32 %v453
    %v462 = vcvt.s32.f32 %v454
    %v463 = vcvt.s32.f32 %v455
    %v464 = vcvt.s32.f32 %v456
    %v465 = vcvt.s32.f32 %v457
    %v466 = vcvt.s32.f32 %v458
    %v467 = vadd.f32 %v429, %v459
    %v468 = vadd.f32 %v430, %v460
    %v469 = vadd.f32 %v431, %v461
    %v470 = vadd.f32 %v432, %v462
    %v471 = vadd.f32 %v433, %v463
    %v472 = vadd.f32 %v434, %v464
    %v473 = vadd.f32 %v435, %v465
    %v474 = vadd.f32 %v436, %v466
    %v475 = vpack.c.bf16 %v471, %v467
    %v476 = vpack.c.bf16 %v472, %v468
    %v477 = vpack.c.bf16 %v473, %v469
    %v478 = vpack.c.bf16 %v474, %v470
    %v479 = vld [vmem:[#allocation5] sm:$0xf]
    %v480 = vld [vmem:[#allocation5 + $0x4] sm:$0xf]
    %v481 = vld [vmem:[#allocation5 + $0x8] sm:$0xf]
    %v482 = vld [vmem:[#allocation5 + $0xc] sm:$0xf]
    %v483 = vld [vmem:[#allocation5 + $0x10] sm:$0xf]
    %v484 = vld [vmem:[#allocation5 + $0x14] sm:$0xf]
    %v485 = vld [vmem:[#allocation5 + $0x18] sm:$0xf]
    %v486 = vld [vmem:[#allocation5 + $0x1c] sm:$0xf]
    %v487 = vld [vmem:[#allocation5 + $0x20] sm:$0xf]
    %v488 = vld [vmem:[#allocation5 + $0x24] sm:$0xf]
    %v489 = vld [vmem:[#allocation5 + $0x28] sm:$0xf]
    %v490 = vld [vmem:[#allocation5 + $0x2c] sm:$0xf]
    %v491 = vld [vmem:[#allocation5 + $0x30] sm:$0xf]
    %v492 = vld [vmem:[#allocation5 + $0x34] sm:$0xf]
    %v493 = vld [vmem:[#allocation5 + $0x38] sm:$0xf]
    %v494 = vld [vmem:[#allocation5 + $0x3c] sm:$0xf]
    %v495 = vld [vmem:[#allocation5 + $0x40] sm:$0xf]
    %v496 = vld [vmem:[#allocation5 + $0x44] sm:$0xf]
    %v497 = vld [vmem:[#allocation5 + $0x48] sm:$0xf]
    %v498 = vld [vmem:[#allocation5 + $0x4c] sm:$0xf]
    %v499 = vld [vmem:[#allocation5 + $0x50] sm:$0xf]
    %v500 = vld [vmem:[#allocation5 + $0x54] sm:$0xf]
    %v501 = vld [vmem:[#allocation5 + $0x58] sm:$0xf]
    %v502 = vld [vmem:[#allocation5 + $0x5c] sm:$0xf]
    %v503 = vld [vmem:[#allocation5 + $0x60] sm:$0xf]
    %v504 = vld [vmem:[#allocation5 + $0x64] sm:$0xf]
    %v505 = vld [vmem:[#allocation5 + $0x68] sm:$0xf]
    %v506 = vld [vmem:[#allocation5 + $0x6c] sm:$0xf]
    %v507 = vld [vmem:[#allocation5 + $0x70] sm:$0xf]
    %v508 = vld [vmem:[#allocation5 + $0x74] sm:$0xf]
    %v509 = vld [vmem:[#allocation5 + $0x78] sm:$0xf]
    %v510 = vld [vmem:[#allocation5 + $0x7c] sm:$0xf]
    %v511 = vld [vmem:[#allocation5 + $0x80] sm:$0xf]
    %v512 = vld [vmem:[#allocation5 + $0x84] sm:$0xf]
    %v513 = vld [vmem:[#allocation5 + $0x88] sm:$0xf]
    %v514 = vld [vmem:[#allocation5 + $0x8c] sm:$0xf]
    %v515 = vld [vmem:[#allocation5 + $0x90] sm:$0xf]
    %v516 = vld [vmem:[#allocation5 + $0x94] sm:$0xf]
    %v517 = vld [vmem:[#allocation5 + $0x98] sm:$0xf]
    %v518 = vld [vmem:[#allocation5 + $0x9c] sm:$0xf]
    %v519 = vld [vmem:[#allocation5 + $0xa0] sm:$0xf]
    %v520 = vld [vmem:[#allocation5 + $0xa4] sm:$0xf]
    %v521 = vld [vmem:[#allocation5 + $0xa8] sm:$0xf]
    %v522 = vld [vmem:[#allocation5 + $0xac] sm:$0xf]
    %v523 = vld [vmem:[#allocation5 + $0xb0] sm:$0xf]
    %v524 = vld [vmem:[#allocation5 + $0xb4] sm:$0xf]
    %v525 = vld [vmem:[#allocation5 + $0xb8] sm:$0xf]
    %v526 = vld [vmem:[#allocation5 + $0xbc] sm:$0xf]
    %v527 = vld [vmem:[#allocation5 + $0xc0] sm:$0xf]
    %v528 = vld [vmem:[#allocation5 + $0xc4] sm:$0xf]
    %v529 = vld [vmem:[#allocation5 + $0xc8] sm:$0xf]
    %v530 = vld [vmem:[#allocation5 + $0xcc] sm:$0xf]
    %v531 = vld [vmem:[#allocation5 + $0xd0] sm:$0xf]
    %v532 = vld [vmem:[#allocation5 + $0xd4] sm:$0xf]
    %v533 = vld [vmem:[#allocation5 + $0xd8] sm:$0xf]
    %v534 = vld [vmem:[#allocation5 + $0xdc] sm:$0xf]
    %v535 = vld [vmem:[#allocation5 + $0xe0] sm:$0xf]
    %v536 = vld [vmem:[#allocation5 + $0xe4] sm:$0xf]
    %v537 = vld [vmem:[#allocation5 + $0xe8] sm:$0xf]
    %v538 = vld [vmem:[#allocation5 + $0xec] sm:$0xf]
    %v539 = vld [vmem:[#allocation5 + $0xf0] sm:$0xf]
    %v540 = vld [vmem:[#allocation5 + $0xf4] sm:$0xf]
    %v541 = vld [vmem:[#allocation5 + $0xf8] sm:$0xf]
    %v542 = vld [vmem:[#allocation5 + $0xfc] sm:$0xf]
    %v607 = vunpack.c.l.b16 %v479
    %v608 = vunpack.c.l.b16 %v480
    %v609 = vunpack.c.l.b16 %v481
    %v610 = vunpack.c.l.b16 %v482
    %v611 = vunpack.c.l.b16 %v483
    %v612 = vunpack.c.l.b16 %v484
    %v613 = vunpack.c.l.b16 %v485
    %v614 = vunpack.c.l.b16 %v486
    %v615 = vunpack.c.l.b16 %v487
    %v616 = vunpack.c.l.b16 %v488
    %v617 = vunpack.c.l.b16 %v489
    %v618 = vunpack.c.l.b16 %v490
    %v619 = vunpack.c.l.b16 %v491
    %v620 = vunpack.c.l.b16 %v492
    %v621 = vunpack.c.l.b16 %v493
    %v622 = vunpack.c.l.b16 %v494
    %v623 = vunpack.c.l.b16 %v495
    %v624 = vunpack.c.l.b16 %v496
    %v625 = vunpack.c.l.b16 %v497
    %v626 = vunpack.c.l.b16 %v498
    %v627 = vunpack.c.l.b16 %v499
    %v628 = vunpack.c.l.b16 %v500
    %v629 = vunpack.c.l.b16 %v501
    %v630 = vunpack.c.l.b16 %v502
    %v631 = vunpack.c.l.b16 %v503
    %v632 = vunpack.c.l.b16 %v504
    %v633 = vunpack.c.l.b16 %v505
    %v634 = vunpack.c.l.b16 %v506
    %v635 = vunpack.c.l.b16 %v507
    %v636 = vunpack.c.l.b16 %v508
    %v637 = vunpack.c.l.b16 %v509
    %v638 = vunpack.c.l.b16 %v510
    %v639 = vunpack.c.l.b16 %v511
    %v640 = vunpack.c.l.b16 %v512
    %v641 = vunpack.c.l.b16 %v513
    %v642 = vunpack.c.l.b16 %v514
    %v643 = vunpack.c.l.b16 %v515
    %v644 = vunpack.c.l.b16 %v516
    %v645 = vunpack.c.l.b16 %v517
    %v646 = vunpack.c.l.b16 %v518
    %v647 = vunpack.c.l.b16 %v519
    %v648 = vunpack.c.l.b16 %v520
    %v649 = vunpack.c.l.b16 %v521
    %v650 = vunpack.c.l.b16 %v522
    %v651 = vunpack.c.l.b16 %v523
    %v652 = vunpack.c.l.b16 %v524
    %v653 = vunpack.c.l.b16 %v525
    %v654 = vunpack.c.l.b16 %v526
    %v655 = vunpack.c.l.b16 %v527
    %v656 = vunpack.c.l.b16 %v528
    %v657 = vunpack.c.l.b16 %v529
    %v658 = vunpack.c.l.b16 %v530
    %v659 = vunpack.c.l.b16 %v531
    %v660 = vunpack.c.l.b16 %v532
    %v661 = vunpack.c.l.b16 %v533
    %v662 = vunpack.c.l.b16 %v534
    %v663 = vunpack.c.l.b16 %v535
    %v664 = vunpack.c.l.b16 %v536
    %v665 = vunpack.c.l.b16 %v537
    %v666 = vunpack.c.l.b16 %v538
    %v667 = vunpack.c.l.b16 %v539
    %v668 = vunpack.c.l.b16 %v540
    %v669 = vunpack.c.l.b16 %v541
    %v670 = vunpack.c.l.b16 %v542
    %v671 = vpack.c.b16 %v608, %v607
    %v672 = vpack.c.b16 %v610, %v609
    %v673 = vpack.c.b16 %v612, %v611
    %v674 = vpack.c.b16 %v614, %v613
    %v675 = vpack.c.b16 %v616, %v615
    %v676 = vpack.c.b16 %v618, %v617
    %v677 = vpack.c.b16 %v620, %v619
    %v678 = vpack.c.b16 %v622, %v621
    %v679 = vpack.c.b16 %v624, %v623
    %v680 = vpack.c.b16 %v626, %v625
    %v681 = vpack.c.b16 %v628, %v627
    %v682 = vpack.c.b16 %v630, %v629
    %v683 = vpack.c.b16 %v632, %v631
    %v684 = vpack.c.b16 %v634, %v633
    %v685 = vpack.c.b16 %v636, %v635
    %v686 = vpack.c.b16 %v638, %v637
    %v687 = vpack.c.b16 %v640, %v639
    %v688 = vpack.c.b16 %v642, %v641
    %v689 = vpack.c.b16 %v644, %v643
    %v690 = vpack.c.b16 %v646, %v645
    %v691 = vpack.c.b16 %v648, %v647
    %v692 = vpack.c.b16 %v650, %v649
    %v693 = vpack.c.b16 %v652, %v651
    %v694 = vpack.c.b16 %v654, %v653
    %v695 = vpack.c.b16 %v656, %v655
    %v696 = vpack.c.b16 %v658, %v657
    %v697 = vpack.c.b16 %v660, %v659
    %v698 = vpack.c.b16 %v662, %v661
    %v699 = vpack.c.b16 %v664, %v663
    %v700 = vpack.c.b16 %v666, %v665
    %v701 = vpack.c.b16 %v668, %v667
    %v702 = vpack.c.b16 %v670, %v669
    %735 = vmatpush.bf16.msra.mxu0 %v678
    %736 = vmatpush.bf16.msra.mxu0 %v677
    %737 = vmatpush.bf16.msra.mxu0 %v676
    %738 = vmatpush.bf16.msra.mxu0 %v675
    %739 = vmatpush.bf16.msra.mxu0 %v674
    %740 = vmatpush.bf16.msra.mxu0 %v673
    %741 = vmatpush.bf16.msra.mxu0 %v672
    %742 = vmatpush.bf16.msra.mxu0 %v671
    %743 = vmatmul.bf16.gmra.mxu0 %v475
    %v744 = vpop.f32.mrf.mxu0
    %v745 = vadd.f32 0.0, %v744
    %v746 = vpop.f32.mrf.mxu0
    %v747 = vadd.f32 0.0, %v746
    %748 = vdwg.mxu0
    %749 = vmatpush.bf16.msra.mxu0 %v686
    %750 = vmatpush.bf16.msra.mxu0 %v685
    %751 = vmatpush.bf16.msra.mxu0 %v684
    %752 = vmatpush.bf16.msra.mxu0 %v683
    %753 = vmatpush.bf16.msra.mxu0 %v682
    %754 = vmatpush.bf16.msra.mxu0 %v681
    %755 = vmatpush.bf16.msra.mxu0 %v680
    %756 = vmatpush.bf16.msra.mxu0 %v679
    %757 = vmatmul.bf16.gmra.mxu0 %v476
    %v758 = vpop.f32.mrf.mxu0
    %v759 = vadd.f32 %v745, %v758
    %v760 = vpop.f32.mrf.mxu0
    %v761 = vadd.f32 %v747, %v760
    %762 = vdwg.mxu0
    %763 = vmatpush.bf16.msra.mxu0 %v694
    %764 = vmatpush.bf16.msra.mxu0 %v693
    %765 = vmatpush.bf16.msra.mxu0 %v692
    %766 = vmatpush.bf16.msra.mxu0 %v691
    %767 = vmatpush.bf16.msra.mxu0 %v690
    %768 = vmatpush.bf16.msra.mxu0 %v689
    %769 = vmatpush.bf16.msra.mxu0 %v688
    %770 = vmatpush.bf16.msra.mxu0 %v687
    %771 = vmatmul.bf16.gmra.mxu0 %v477
    %v772 = vpop.f32.mrf.mxu0
    %v773 = vadd.f32 %v759, %v772
    %v774 = vpop.f32.mrf.mxu0
    %v775 = vadd.f32 %v761, %v774
    %776 = vdwg.mxu0
    %777 = vmatpush.bf16.msra.mxu0 %v702
    %778 = vmatpush.bf16.msra.mxu0 %v701
    %779 = vmatpush.bf16.msra.mxu0 %v700
    %780 = vmatpush.bf16.msra.mxu0 %v699
    %781 = vmatpush.bf16.msra.mxu0 %v698
    %782 = vmatpush.bf16.msra.mxu0 %v697
    %783 = vmatpush.bf16.msra.mxu0 %v696
    %784 = vmatpush.bf16.msra.mxu0 %v695
    %785 = vmatmul.bf16.gmra.mxu0 %v478
    %v786 = vpop.f32.mrf.mxu0
    %v787 = vadd.f32 %v773, %v786
    %v788 = vpop.f32.mrf.mxu0
    %v789 = vadd.f32 %v775, %v788
    %790 = vdwg.mxu0
    %791 = vadd.xlane.f32.xlu0 %v787
    %v792 = vpop.xlane.xlu0 %791
    %793 = vadd.xlane.f32.xlu0 %v789
    %v794 = vpop.xlane.xlu0 %793
    %v795 = vmul.f32 %v792, 0.03125
    %v796 = vmul.f32 %v794, 0.03125
    %v797 = vmul.f32 %v787, %v787
    %v798 = vmul.f32 %v789, %v789
    %799 = vadd.xlane.f32.xlu0 %v797
    %v800 = vpop.xlane.xlu0 %799
    %801 = vadd.xlane.f32.xlu0 %v798
    %v802 = vpop.xlane.xlu0 %801
    %v803 = vmul.f32 %v800, 0.03125
    %v804 = vmul.f32 %v802, 0.03125
    %v805 = vmul.f32 %v795, %v795
    %v806 = vmul.f32 %v796, %v796
    %v807 = vsub.f32 %v803, %v805
    %v808 = vsub.f32 %v804, %v806
    %v809 = vsub.f32 %v787, %v795
    %v810 = vsub.f32 %v789, %v796
    %v811 = vadd.f32 %v807, 1e-12
    %v812 = vadd.f32 %v808, 1e-12
    %v813 = vrsqrt.pop %v811
    %v814 = vmul.f32 %v813, %v811
    %v815 = vmul.f32 %v814, %v813
    %v816 = vmul.f32 0.5, %v815
    %v817 = vsub.f32 1.5, %v816
    %v818 = vmul.f32 %v813, %v817
    %vm819 = vweird.f32 %v811
    %vm820 = vweird.f32 %v813
    %vm821 = vmor %vm819, %vm820
    %v822 = vsel %vm821, %v813, %v818
    %v823 = vrsqrt.pop %v812
    %v824 = vmul.f32 %v823, %v812
    %v825 = vmul.f32 %v824, %v823
    %v826 = vmul.f32 0.5, %v825
    %v827 = vsub.f32 1.5, %v826
    %v828 = vmul.f32 %v823, %v827
    %vm829 = vweird.f32 %v812
    %vm830 = vweird.f32 %v823
    %vm831 = vmor %vm829, %vm830
    %v832 = vsel %vm831, %v823, %v828
    %v833 = vmul.f32 %v809, %v822
    %v834 = vmul.f32 %v810, %v832
    %v835 = vld [vmem:[%s2] sm:$0x1]
    %v837 = vperm.slane %v835, 0
    %v839 = vmul.f32 %v837, %v833
    %v840 = vmul.f32 %v837, %v834
    %v841 = vld [vmem:[%s3] sm:$0x1]
    %v843 = vperm.slane %v841, 0
    %v845 = vadd.f32 %v839, %v843
    %v846 = vadd.f32 %v840, %v843
    %847 = vst [vmem:[#allocation7] sm:$0xff] %v845
    %848 = vst [vmem:[#allocation7 + $0x8] sm:$0xff] %v846
    // Predicated region
    $region26: #{tpu_custom_call.1} parent=1 // pred_check
      _
    $region27: #{tpu_custom_call.1} parent=1 // pred_check_branch
      %850 = sbr.rel (0) target = $region29
    $region28: #{tpu_custom_call.1} parent=1 // pred_region
      %852 = vsyncadd [#allocation4], 0
      %s853 = sshll.u32 [#allocation7], 4
      %s854 = int_to_ptr.vmem [resolvable:$true] %s853
      %s855 = sshll.u32 %s4, 4
      %s856 = int_to_ptr.hbm [resolvable:$true] %s855
      %861 = dma.vmem_to_hbm [thread:$0]  %s854, 256, %s856, [#allocation4], 128, 128, 8
    $region29: #{tpu_custom_call.1} parent=1 // pred_fallthru
      _
    // Predicated region
    $region30: #{tpu_custom_call.1} parent=1 // pred_check
      _
    $region31: #{tpu_custom_call.1} parent=1 // pred_check_branch
      %863 = sbr.rel (0) target = $region33
    $region32: #{tpu_custom_call.1} parent=1 // pred_region
      %865 = dma.done [#allocation4], 256
    $region33: #{tpu_custom_call.1} parent=1 // pred_fallthru
      _
    %866 = vsyncpa [#allocation3], 1
    %867 = vsyncpa [#allocation6], 1
    %868 = vsyncpa [#allocation4], 1

</llo_original>
